<compile_context>
chip_gen: v7x
topology: tpu7x:2x2x1
jax: 0.10.0
libtpu: 0.0.40
codegen_flags: <defaults>
</compile_context>

<pallas_src>
import functools

import jax
import jax.numpy as jnp
import numpy as np
from jax.experimental import pallas as pl
from jax.experimental.pallas import tpu as pltpu

_EPS = 1e-8


def _qloss_pred_kernel(slab_ref, sel_ref, pick_ref, qlrms_ref, out_ref, *,
                       num_gaps, chan_lanes, norm):
    """pred-side Q for all channel pairs + final |q_pred - q_lrms| reduction.

    slab_ref : (H, L) with L = C*B*W, lane layout (channel, batch, width).
    sel_ref  : (L, P) constant; sel[l, p] = 1/(B*W) iff lane l belongs to channel
               i_p (gather-reduce matrix -> per-pair mean over (b, w)).
    pick_ref : (DP, P) constant; pick[d-1, p] = 1 iff pair p has channel gap d.
    qlrms_ref: (1, P) q_lrms per pair (pred-independent, hoisted to plain JAX).
    out_ref  : (1, 1) f32 in SMEM; the loss scalar.
    """
    x = slab_ref[...].astype(jnp.float32)            # (H, L): 2 dense f32 vregs
    h, l = x.shape
    eps = jnp.float32(_EPS)

    # Per-column centered moments, computed once for all pairs (dense, lane-full).
    xm = jnp.mean(x, axis=0, keepdims=True)           # (1, L)  E[x]
    xc = x - xm                                        # centered (matches torch)
    xv = jnp.mean(xc * xc, axis=0, keepdims=True)      # (1, L)  var (unbiased=False)

    def rot(a, n):
        # Static lane rotate-left by n: out[:, j] = a[:, (j + n) % L].
        # Written as two static slices + lane concat so the direction is
        # unambiguous; lowers to cheap XLU lane shuffles.
        return jnp.concatenate([a[:, n:], a[:, :n]], axis=1)

    # Batched over the channel gap d = 1..num_gaps: row d-1, lane (c, b, w) holds
    # the (c, c+d) pair statistic; lanes with c+d >= C wrap to other (finite) data
    # and are masked out by sel/pick below.
    shifts = [d * chan_lanes for d in range(1, num_gaps + 1)]
    ym = jnp.concatenate([rot(xm, s) for s in shifts], axis=0)         # (D, L)
    yv = jnp.concatenate([rot(xv, s) for s in shifts], axis=0)         # (D, L)
    cov = jnp.concatenate(
        [jnp.mean(xc * rot(xc, s), axis=0, keepdims=True) for s in shifts],
        axis=0)                                                        # (D, L)

    # One dense cc/lum/cxcy chain for every pair at once (no approx reciprocals).
    cc = cov * jax.lax.rsqrt(xv * yv + eps)                            # (D, L)
    lum = (2.0 * xm * ym) / (xm * xm + ym * ym + eps)                  # (D, L)
    den = xv + yv + eps
    cxcy = 4.0 * jnp.sqrt((xv + eps) * (yv + eps)) / (den * den)       # (D, L)
    q = cc * lum * cxcy                                                # (D, L)

    # Pad the gap axis to a full sublane tile so the gather-reduce matmul is aligned.
    dp = pick_ref.shape[0]
    if dp > num_gaps:
        q = jnp.concatenate(
            [q, jnp.zeros((dp - num_gaps, l), jnp.float32)], axis=0)   # (DP, L)

    # Per-pair mean over the channel-i lanes: one small MXU matmul, then pick the
    # row matching each pair's gap. Replaces 6 serial reduce->scalar->add chains.
    per_gap = jnp.dot(q, sel_ref[...], preferred_element_type=jnp.float32)  # (DP, P)
    q_pred = jnp.sum(per_gap * pick_ref[...], axis=0, keepdims=True)        # (1, P)

    out_ref[0, 0] = jnp.sum(jnp.abs(q_pred - qlrms_ref[...])) * jnp.float32(norm)


def _q_lrms_pairs(lrms, pairs):
    """q_lrms for every channel pair. pred-independent, so it is hoisted out of the
    Pallas kernel (perf review) and computed once in plain JAX via a centered Gram."""
    c = lrms.shape[0]
    x = lrms.reshape(c, -1).astype(jnp.float32)
    n = x.shape[1]
    m = jnp.mean(x, axis=1)                           # (C,)
    xc = x - m[:, None]
    cov = (xc @ xc.T) / n                             # (C, C): diag = var, off = cov
    v = jnp.diagonal(cov)
    i = jnp.asarray([p[0] for p in pairs])
    j = jnp.asarray([p[1] for p in pairs])
    eps = jnp.float32(_EPS)
    cc = cov[i, j] / jnp.sqrt(v[i] * v[j] + eps)
    lum = 2.0 * m[i] * m[j] / (m[i] ** 2 + m[j] ** 2 + eps)
    den = v[i] + v[j] + eps
    cxcy = 4.0 * jnp.sqrt((v[i] + eps) * (v[j] + eps)) / (den * den)
    return cc * lum * cxcy                            # (n_pairs,)


def qloss(pred, target, p, lrms):
    """Forward of QLoss. `target` and `p` (PAN image) are unused, as in PyTorch."""
    del target, p
    b, c, h, w = pred.shape
    pairs = [(i, j) for i in range(c) for j in range(i + 1, c)]
    n_pairs = len(pairs)
    chan_lanes = b * w                                  # lanes per channel block
    n_lanes = c * chan_lanes                            # pred slab lane width
    n_pad = max(128, -(-n_pairs // 128) * 128)          # pair columns (lane-aligned)
    dp = -(-(c - 1) // 8) * 8                           # gap rows (sublane-aligned)

    # Lane-dense relayout (layout plumbing only): (B,C,H,W) -> (H,C,B,W) -> (H, C*B*W).
    slab = jnp.transpose(pred, (2, 1, 0, 3)).reshape(h, n_lanes)

    # pred-independent side, computed once outside the kernel.
    q_lrms = _q_lrms_pairs(lrms, pairs)                               # (n_pairs,)
    q_lrms_row = jnp.pad(q_lrms, (0, n_pad - n_pairs)).reshape(1, n_pad)

    # Constant selection matrices (host-side numpy -> jit-time constants).
    sel = np.zeros((n_lanes, n_pad), np.float32)
    pick = np.zeros((dp, n_pad), np.float32)
    for p_idx, (i, j) in enumerate(pairs):
        sel[i * chan_lanes:(i + 1) * chan_lanes, p_idx] = 1.0 / chan_lanes
        pick[j - i - 1, p_idx] = 1.0

    cost = pl.CostEstimate(
        flops=int(2 * h * n_lanes * (c + 2) + 30 * (c - 1) * n_lanes
                  + 2 * dp * n_lanes * n_pad),
        transcendentals=int(2 * (c - 1) * n_lanes),
        bytes_accessed=int(slab.size * slab.dtype.itemsize
                           + (sel.size + pick.size + n_pad + 1) * 4),
    )

    kernel = functools.partial(
        _qloss_pred_kernel,
        num_gaps=c - 1, chan_lanes=chan_lanes, norm=1.0 / (c * (c - 1)))

    out = pl.pallas_call(
        kernel,
        out_shape=jax.ShapeDtypeStruct((1, 1), jnp.float32),
        in_specs=[
            pl.BlockSpec(memory_space=pltpu.MemorySpace.VMEM),   # pred slab
            pl.BlockSpec(memory_space=pltpu.MemorySpace.VMEM),   # sel
            pl.BlockSpec(memory_space=pltpu.MemorySpace.VMEM),   # pick
            pl.BlockSpec(memory_space=pltpu.MemorySpace.VMEM),   # q_lrms row
        ],
        out_specs=pl.BlockSpec(memory_space=pltpu.MemorySpace.SMEM),
        cost_estimate=cost,
    )(slab, jnp.asarray(sel), jnp.asarray(pick), q_lrms_row)
    return out[0, 0]


# ---------------- pure-JAX reference (mirrors the PyTorch code) ----------------
def _calculate_Q_ref(x, y):
    xm = jnp.mean(x, axis=(1, 2), keepdims=True)
    ym = jnp.mean(y, axis=(1, 2), keepdims=True)
    xv = jnp.var(x, axis=(1, 2), keepdims=True)
    yv = jnp.var(y, axis=(1, 2), keepdims=True)
    cov = jnp.mean((x - xm) * (y - ym), axis=(1, 2), keepdims=True)
    cc = cov / jnp.sqrt(xv * yv + _EPS)
    lum = 2 * xm * ym / (xm ** 2 + ym ** 2 + _EPS)
    cx = 2 * jnp.sqrt(xv + _EPS) / (xv + yv + _EPS)
    cy = 2 * jnp.sqrt(yv + _EPS) / (xv + yv + _EPS)
    return jnp.mean(cc * lum * cx * cy)


def _qloss_ref(pred, target, p, lrms):
    b, c, h, w = pred.shape
    ret = 0.0
    for i in range(c):
        for j in range(i + 1, c):
            ret += jnp.abs(
                _calculate_Q_ref(pred[:, i:i + 1], pred[:, j:j + 1])
                - _calculate_Q_ref(lrms[i:i + 1], lrms[j:j + 1]))
    return ret / (c * (c - 1))


if __name__ == "__main__":
    key = jax.random.PRNGKey(0)
    k1, k2, k3, k4 = jax.random.split(key, 4)
    B, C, H, W = 2, 4, 16, 16
    pred = jax.random.uniform(k1, (B, C, H, W), jnp.float32)
    target = jax.random.uniform(k2, (B, C, H, W), jnp.float32)   # unused by forward
    pan = jax.random.uniform(k3, (B, 1, H, W), jnp.float32)      # unused by forward
    lrms = jax.random.uniform(k4, (C, H // 2, W // 2), jnp.float32)

    loss = jax.jit(qloss)(pred, target, pan, lrms)
    loss = jax.block_until_ready(loss)

    ref = _qloss_ref(pred, target, pan, lrms)
    if not jnp.allclose(loss, ref, rtol=1e-3, atol=1e-5):
        raise AssertionError(f"mismatch: pallas={loss} ref={ref}")

    print("KERNEL_OK")
</pallas_src>

<mosaic_0001>
module attributes {stable_mosaic.version = 11 : i64} {
  func.func @_qloss_pred_kernel(%arg0: memref<16x128xf32, #tpu.memory_space<vmem>>, %arg1: memref<128x128xf32, #tpu.memory_space<vmem>>, %arg2: memref<8x128xf32, #tpu.memory_space<vmem>>, %arg3: memref<1x128xf32, #tpu.memory_space<vmem>>, %arg4: memref<1x1xf32, #tpu.memory_space<smem>>) attributes {dimension_semantics = [], scalar_prefetch = 0 : i64, scratch_operands = 0 : i64, tpu.core_type = #tpu.core_type<tc>} {
    %c0 = arith.constant 0 : index
    %c0_0 = arith.constant 0 : index
    %0 = vector.load %arg0[%c0, %c0_0] : memref<16x128xf32, #tpu.memory_space<vmem>>, vector<16x128xf32>
    %cst = arith.constant dense<0.000000e+00> : vector<128xf32>
    %1 = vector.multi_reduction <add>, %0, %cst [0] : vector<16x128xf32> to vector<128xf32>
    %2 = vector.shape_cast %1 : vector<128xf32> to vector<1x128xf32>
    %cst_1 = arith.constant 1.600000e+01 : f32
    %3 = vector.broadcast %cst_1 : f32 to vector<1x128xf32>
    %4 = arith.divf %2, %3 : vector<1x128xf32>
    %5 = vector.broadcast %4 : vector<1x128xf32> to vector<16x128xf32>
    %6 = arith.subf %0, %5 : vector<16x128xf32>
    %7 = arith.mulf %6, %6 : vector<16x128xf32>
    %cst_2 = arith.constant dense<0.000000e+00> : vector<128xf32>
    %8 = vector.multi_reduction <add>, %7, %cst_2 [0] : vector<16x128xf32> to vector<128xf32>
    %9 = vector.shape_cast %8 : vector<128xf32> to vector<1x128xf32>
    %cst_3 = arith.constant 1.600000e+01 : f32
    %10 = vector.broadcast %cst_3 : f32 to vector<1x128xf32>
    %11 = arith.divf %9, %10 : vector<1x128xf32>
    %12 = vector.extract_strided_slice %4 {offsets = [0, 32], sizes = [1, 96], strides = [1, 1]} : vector<1x128xf32> to vector<1x96xf32>
    %13 = vector.extract_strided_slice %4 {offsets = [0, 0], sizes = [1, 32], strides = [1, 1]} : vector<1x128xf32> to vector<1x32xf32>
    %14 = tpu.concatenate %12, %13 in 1 : vector<1x96xf32>, vector<1x32xf32> -> vector<1x128xf32>
    %15 = vector.extract_strided_slice %4 {offsets = [0, 64], sizes = [1, 64], strides = [1, 1]} : vector<1x128xf32> to vector<1x64xf32>
    %16 = vector.extract_strided_slice %4 {offsets = [0, 0], sizes = [1, 64], strides = [1, 1]} : vector<1x128xf32> to vector<1x64xf32>
    %17 = tpu.concatenate %15, %16 in 1 : vector<1x64xf32>, vector<1x64xf32> -> vector<1x128xf32>
    %18 = vector.extract_strided_slice %4 {offsets = [0, 96], sizes = [1, 32], strides = [1, 1]} : vector<1x128xf32> to vector<1x32xf32>
    %19 = vector.extract_strided_slice %4 {offsets = [0, 0], sizes = [1, 96], strides = [1, 1]} : vector<1x128xf32> to vector<1x96xf32>
    %20 = tpu.concatenate %18, %19 in 1 : vector<1x32xf32>, vector<1x96xf32> -> vector<1x128xf32>
    %21 = tpu.concatenate %14, %17, %20 in 0 : vector<1x128xf32>, vector<1x128xf32>, vector<1x128xf32> -> vector<3x128xf32>
    %22 = vector.extract_strided_slice %11 {offsets = [0, 32], sizes = [1, 96], strides = [1, 1]} : vector<1x128xf32> to vector<1x96xf32>
    %23 = vector.extract_strided_slice %11 {offsets = [0, 0], sizes = [1, 32], strides = [1, 1]} : vector<1x128xf32> to vector<1x32xf32>
    %24 = tpu.concatenate %22, %23 in 1 : vector<1x96xf32>, vector<1x32xf32> -> vector<1x128xf32>
    %25 = vector.extract_strided_slice %11 {offsets = [0, 64], sizes = [1, 64], strides = [1, 1]} : vector<1x128xf32> to vector<1x64xf32>
    %26 = vector.extract_strided_slice %11 {offsets = [0, 0], sizes = [1, 64], strides = [1, 1]} : vector<1x128xf32> to vector<1x64xf32>
    %27 = tpu.concatenate %25, %26 in 1 : vector<1x64xf32>, vector<1x64xf32> -> vector<1x128xf32>
    %28 = vector.extract_strided_slice %11 {offsets = [0, 96], sizes = [1, 32], strides = [1, 1]} : vector<1x128xf32> to vector<1x32xf32>
    %29 = vector.extract_strided_slice %11 {offsets = [0, 0], sizes = [1, 96], strides = [1, 1]} : vector<1x128xf32> to vector<1x96xf32>
    %30 = tpu.concatenate %28, %29 in 1 : vector<1x32xf32>, vector<1x96xf32> -> vector<1x128xf32>
    %31 = tpu.concatenate %24, %27, %30 in 0 : vector<1x128xf32>, vector<1x128xf32>, vector<1x128xf32> -> vector<3x128xf32>
    %32 = vector.extract_strided_slice %6 {offsets = [0, 32], sizes = [16, 96], strides = [1, 1]} : vector<16x128xf32> to vector<16x96xf32>
    %33 = vector.extract_strided_slice %6 {offsets = [0, 0], sizes = [16, 32], strides = [1, 1]} : vector<16x128xf32> to vector<16x32xf32>
    %34 = tpu.concatenate %32, %33 in 1 : vector<16x96xf32>, vector<16x32xf32> -> vector<16x128xf32>
    %35 = arith.mulf %6, %34 : vector<16x128xf32>
    %cst_4 = arith.constant dense<0.000000e+00> : vector<128xf32>
    %36 = vector.multi_reduction <add>, %35, %cst_4 [0] : vector<16x128xf32> to vector<128xf32>
    %37 = vector.shape_cast %36 : vector<128xf32> to vector<1x128xf32>
    %cst_5 = arith.constant 1.600000e+01 : f32
    %38 = vector.broadcast %cst_5 : f32 to vector<1x128xf32>
    %39 = arith.divf %37, %38 : vector<1x128xf32>
    %40 = vector.extract_strided_slice %6 {offsets = [0, 64], sizes = [16, 64], strides = [1, 1]} : vector<16x128xf32> to vector<16x64xf32>
    %41 = vector.extract_strided_slice %6 {offsets = [0, 0], sizes = [16, 64], strides = [1, 1]} : vector<16x128xf32> to vector<16x64xf32>
    %42 = tpu.concatenate %40, %41 in 1 : vector<16x64xf32>, vector<16x64xf32> -> vector<16x128xf32>
    %43 = arith.mulf %6, %42 : vector<16x128xf32>
    %cst_6 = arith.constant dense<0.000000e+00> : vector<128xf32>
    %44 = vector.multi_reduction <add>, %43, %cst_6 [0] : vector<16x128xf32> to vector<128xf32>
    %45 = vector.shape_cast %44 : vector<128xf32> to vector<1x128xf32>
    %cst_7 = arith.constant 1.600000e+01 : f32
    %46 = vector.broadcast %cst_7 : f32 to vector<1x128xf32>
    %47 = arith.divf %45, %46 : vector<1x128xf32>
    %48 = vector.extract_strided_slice %6 {offsets = [0, 96], sizes = [16, 32], strides = [1, 1]} : vector<16x128xf32> to vector<16x32xf32>
    %49 = vector.extract_strided_slice %6 {offsets = [0, 0], sizes = [16, 96], strides = [1, 1]} : vector<16x128xf32> to vector<16x96xf32>
    %50 = tpu.concatenate %48, %49 in 1 : vector<16x32xf32>, vector<16x96xf32> -> vector<16x128xf32>
    %51 = arith.mulf %6, %50 : vector<16x128xf32>
    %cst_8 = arith.constant dense<0.000000e+00> : vector<128xf32>
    %52 = vector.multi_reduction <add>, %51, %cst_8 [0] : vector<16x128xf32> to vector<128xf32>
    %53 = vector.shape_cast %52 : vector<128xf32> to vector<1x128xf32>
    %cst_9 = arith.constant 1.600000e+01 : f32
    %54 = vector.broadcast %cst_9 : f32 to vector<1x128xf32>
    %55 = arith.divf %53, %54 : vector<1x128xf32>
    %56 = tpu.concatenate %39, %47, %55 in 0 : vector<1x128xf32>, vector<1x128xf32>, vector<1x128xf32> -> vector<3x128xf32>
    %57 = vector.broadcast %11 : vector<1x128xf32> to vector<3x128xf32>
    %58 = arith.mulf %57, %31 : vector<3x128xf32>
    %cst_10 = arith.constant 9.99999993E-9 : f32
    %59 = vector.broadcast %cst_10 : f32 to vector<3x128xf32>
    %60 = arith.addf %58, %59 : vector<3x128xf32>
    %61 = math.rsqrt %60 : vector<3x128xf32>
    %62 = arith.mulf %56, %61 : vector<3x128xf32>
    %cst_11 = arith.constant 2.000000e+00 : f32
    %63 = vector.broadcast %cst_11 : f32 to vector<1x128xf32>
    %64 = arith.mulf %63, %4 : vector<1x128xf32>
    %65 = vector.broadcast %64 : vector<1x128xf32> to vector<3x128xf32>
    %66 = arith.mulf %65, %21 : vector<3x128xf32>
    %67 = arith.mulf %4, %4 : vector<1x128xf32>
    %68 = arith.mulf %21, %21 : vector<3x128xf32>
    %69 = vector.broadcast %67 : vector<1x128xf32> to vector<3x128xf32>
    %70 = arith.addf %69, %68 : vector<3x128xf32>
    %cst_12 = arith.constant 9.99999993E-9 : f32
    %71 = vector.broadcast %cst_12 : f32 to vector<3x128xf32>
    %72 = arith.addf %70, %71 : vector<3x128xf32>
    %73 = arith.divf %66, %72 : vector<3x128xf32>
    %74 = vector.broadcast %11 : vector<1x128xf32> to vector<3x128xf32>
    %75 = arith.addf %74, %31 : vector<3x128xf32>
    %cst_13 = arith.constant 9.99999993E-9 : f32
    %76 = vector.broadcast %cst_13 : f32 to vector<3x128xf32>
    %77 = arith.addf %75, %76 : vector<3x128xf32>
    %cst_14 = arith.constant 9.99999993E-9 : f32
    %78 = vector.broadcast %cst_14 : f32 to vector<1x128xf32>
    %79 = arith.addf %11, %78 : vector<1x128xf32>
    %cst_15 = arith.constant 9.99999993E-9 : f32
    %80 = vector.broadcast %cst_15 : f32 to vector<3x128xf32>
    %81 = arith.addf %31, %80 : vector<3x128xf32>
    %82 = vector.broadcast %79 : vector<1x128xf32> to vector<3x128xf32>
    %83 = arith.mulf %82, %81 : vector<3x128xf32>
    %84 = math.sqrt %83 : vector<3x128xf32>
    %cst_16 = arith.constant 4.000000e+00 : f32
    %85 = vector.broadcast %cst_16 : f32 to vector<3x128xf32>
    %86 = arith.mulf %85, %84 : vector<3x128xf32>
    %87 = arith.mulf %77, %77 : vector<3x128xf32>
    %88 = arith.divf %86, %87 : vector<3x128xf32>
    %89 = arith.mulf %62, %73 : vector<3x128xf32>
    %90 = arith.mulf %89, %88 : vector<3x128xf32>
    %cst_17 = arith.constant 0.000000e+00 : f32
    %91 = vector.broadcast %cst_17 : f32 to vector<5x128xf32>
    %92 = tpu.concatenate %90, %91 in 0 : vector<3x128xf32>, vector<5x128xf32> -> vector<8x128xf32>
    %c0_18 = arith.constant 0 : index
    %c0_19 = arith.constant 0 : index
    %93 = vector.load %arg1[%c0_18, %c0_19] : memref<128x128xf32, #tpu.memory_space<vmem>>, vector<128x128xf32>
    %cst_20 = arith.constant dense<0.000000e+00> : vector<8x128xf32>
    %94 = tpu.matmul %92, %93, %cst_20 {dimension_numbers = #tpu.dot_dimension_numbers<[1], [0], [0], [1], [0, 0, 1, 1], [], []>} : vector<8x128xf32>, vector<128x128xf32>, vector<8x128xf32> -> vector<8x128xf32>
    %c0_21 = arith.constant 0 : index
    %c0_22 = arith.constant 0 : index
    %95 = vector.load %arg2[%c0_21, %c0_22] : memref<8x128xf32, #tpu.memory_space<vmem>>, vector<8x128xf32>
    %96 = arith.mulf %94, %95 : vector<8x128xf32>
    %cst_23 = arith.constant dense<0.000000e+00> : vector<128xf32>
    %97 = vector.multi_reduction <add>, %96, %cst_23 [0] : vector<8x128xf32> to vector<128xf32>
    %98 = vector.shape_cast %97 : vector<128xf32> to vector<1x128xf32>
    %c0_24 = arith.constant 0 : index
    %c0_25 = arith.constant 0 : index
    %99 = vector.load %arg3[%c0_24, %c0_25] : memref<1x128xf32, #tpu.memory_space<vmem>>, vector<1x128xf32>
    %100 = arith.subf %98, %99 : vector<1x128xf32>
    %101 = math.absf %100 : vector<1x128xf32>
    %102 = vector.shape_cast %101 : vector<1x128xf32> to vector<1x1x128xf32>
    %cst_26 = arith.constant dense<0.000000e+00> : vector<1xf32>
    %103 = vector.multi_reduction <add>, %102, %cst_26 [1, 2] : vector<1x1x128xf32> to vector<1xf32>
    %104 = vector.shape_cast %103 : vector<1xf32> to vector<1x1x1xf32>
    %105 = vector.extract %104[0, 0, 0] : f32 from vector<1x1x1xf32>
    %cst_27 = arith.constant 0.0833333358 : f32
    %106 = arith.mulf %105, %cst_27 : f32
    %c0_28 = arith.constant 0 : index
    %c0_29 = arith.constant 0 : index
    %107 = memref.load %arg4[%c0_28, %c0_29] : memref<1x1xf32, #tpu.memory_space<smem>>
    memref.store %106, %arg4[%c0_28, %c0_29] : memref<1x1xf32, #tpu.memory_space<smem>>
    return
  }
}

</mosaic_0001>

<llo_original>
// kernel: qloss.1
$region0: #{qloss.1}
  #allocation0 [shape = 'u32[]', space=smem, size = 0x4, offset = 0x4, fixed_abs, tag = 'smem constant byte address 0x4 - core index']
  #allocation1 [shape = 'u32[144,128]{1,0:T(1,128)}', space=vmem, size = 0x12000, scoped, tag = 'internal scratch']
  %s0 = inlined_call_operand.vmem [shape: f32[16,128], index: 0, kind: input, shape index: {}]
  %s1 = inlined_call_operand.vmem [shape: f32[128,128], index: 1, kind: input, shape index: {}]
  %s2 = inlined_call_operand.vmem [shape: f32[8,128], index: 2, kind: input, shape index: {}]
  %s3 = inlined_call_operand.vmem [shape: f32[1,128], index: 3, kind: input, shape index: {}]
  %s4 = inlined_call_operand.hbm [shape: f32[1,1], index: 4, kind: output, shape index: {}]
  %s5 = sld [smem:[#allocation0]]
  $region26: #{qloss.1} parent=0
    _
  %s7 = ssub.s32 1, %s5
  %s8 = scalar_select 0, %s7, %s5
  $region1: #{qloss.1} parent=0
    #allocation2 [shape = 'u8[512]{0}', space=smem, size = 0x200, scoped, tag = 'output window, operand 0, single buffered']
    #allocation3 [shape = 's32[1]{0}', space=sflag, size = 0x4, scoped, tag = 'scoped memory for qloss.1']
    %9 = vsyncpa [#allocation3], 0
    // Predicated region
    $region2: #{qloss.1} parent=1 // pred_check
      _
    $region3: #{qloss.1} parent=1 // pred_check_branch
      %11 = sbr.rel (0) target = $region5
    $region4: #{qloss.1} parent=1 // pred_region
      _
    $region5: #{qloss.1} parent=1 // pred_fallthru
      _
    // Predicated region
    $region6: #{qloss.1} parent=1 // pred_check
      _
    $region7: #{qloss.1} parent=1 // pred_check_branch
      %13 = sbr.rel (0) target = $region9
    $region8: #{qloss.1} parent=1 // pred_region
      _
    $region9: #{qloss.1} parent=1 // pred_fallthru
      _
    // Predicated region
    $region10: #{qloss.1} parent=1 // pred_check
      _
    $region11: #{qloss.1} parent=1 // pred_check_branch
      %15 = sbr.rel (0) target = $region13
    $region12: #{qloss.1} parent=1 // pred_region
      _
    $region13: #{qloss.1} parent=1 // pred_fallthru
      _
    // Predicated region
    $region14: #{qloss.1} parent=1 // pred_check
      _
    $region15: #{qloss.1} parent=1 // pred_check_branch
      %17 = sbr.rel (0) target = $region17
    $region16: #{qloss.1} parent=1 // pred_region
      _
    $region17: #{qloss.1} parent=1 // pred_fallthru
      _
    %v18 = vld [vmem:[%s0] sm:$0xff]
    %v19 = vld [vmem:[%s0 + $0x8] sm:$0xff]
    %v20 = vadd.f32 %v18, %v19
    %v21 = vrot.slane %v20, 4
    %v22 = vadd.f32 %v20, %v21
    %v23 = vrot.slane %v22, 2
    %v24 = vadd.f32 %v22, %v23
    %v25 = vrot.slane %v24, 1
    %v26 = vadd.f32 %v24, %v25
    %v27 = vrcp.pop 16.0
    %v28 = vmul.f32 %v26, %v27
    %v29 = vsub.f32 %v18, %v28
    %v30 = vsub.f32 %v19, %v28
    %v31 = vmul.f32 %v29, %v29
    %v32 = vmul.f32 %v30, %v30
    %v33 = vadd.f32 %v31, %v32
    %v34 = vrot.slane %v33, 4
    %v35 = vadd.f32 %v33, %v34
    %v36 = vrot.slane %v35, 2
    %v37 = vadd.f32 %v35, %v36
    %v38 = vrot.slane %v37, 1
    %v39 = vadd.f32 %v37, %v38
    %v40 = vmul.f32 %v39, %v27
    %42 = vrot.lane.b32.xlu0 %v28, 96
    %v43 = vpop.permute.xlu0 %42
    %45 = vrot.lane.b32.xlu0 %v28, 64
    %v46 = vpop.permute.xlu0 %45
    %48 = vrot.lane.b32.xlu0 %v28, 32
    %v49 = vpop.permute.xlu0 %48
    %v52 = vrot.slane %v46, 7
    %v55 = vrot.slane %v49, 6
    %vm57 = vcmask 1040384
    %v58 = vsel %vm57, %v43, %v52
    %vm59 = vcmask 1041408
    %v60 = vsel %vm59, %v58, %v55
    %62 = vrot.lane.b32.xlu0 %v40, 96
    %v63 = vpop.permute.xlu0 %62
    %65 = vrot.lane.b32.xlu0 %v40, 64
    %v66 = vpop.permute.xlu0 %65
    %68 = vrot.lane.b32.xlu0 %v40, 32
    %v69 = vpop.permute.xlu0 %68
    %v72 = vrot.slane %v66, 7
    %v75 = vrot.slane %v69, 6
    %v77 = vsel %vm57, %v63, %v72
    %v78 = vsel %vm59, %v77, %v75
    %81 = vrot.lane.b32.xlu0 %v29, 96
    %v82 = vpop.permute.xlu0 %81
    %83 = vrot.lane.b32.xlu0 %v30, 96
    %v84 = vpop.permute.xlu0 %83
    %v87 = vmul.f32 %v29, %v82
    %v88 = vmul.f32 %v30, %v84
    %v89 = vadd.f32 %v87, %v88
    %v90 = vrot.slane %v89, 4
    %v91 = vadd.f32 %v89, %v90
    %v92 = vrot.slane %v91, 2
    %v93 = vadd.f32 %v91, %v92
    %v94 = vrot.slane %v93, 1
    %v95 = vadd.f32 %v93, %v94
    %v96 = vmul.f32 %v95, %v27
    %97 = vrot.lane.b32.xlu0 %v29, 64
    %v98 = vpop.permute.xlu0 %97
    %99 = vrot.lane.b32.xlu0 %v30, 64
    %v100 = vpop.permute.xlu0 %99
    %v103 = vmul.f32 %v29, %v98
    %v104 = vmul.f32 %v30, %v100
    %v105 = vadd.f32 %v103, %v104
    %v106 = vrot.slane %v105, 4
    %v107 = vadd.f32 %v105, %v106
    %v108 = vrot.slane %v107, 2
    %v109 = vadd.f32 %v107, %v108
    %v110 = vrot.slane %v109, 1
    %v111 = vadd.f32 %v109, %v110
    %v112 = vmul.f32 %v111, %v27
    %113 = vrot.lane.b32.xlu0 %v29, 32
    %v114 = vpop.permute.xlu0 %113
    %115 = vrot.lane.b32.xlu0 %v30, 32
    %v116 = vpop.permute.xlu0 %115
    %v119 = vmul.f32 %v29, %v114
    %v120 = vmul.f32 %v30, %v116
    %v121 = vadd.f32 %v119, %v120
    %v122 = vrot.slane %v121, 4
    %v123 = vadd.f32 %v121, %v122
    %v124 = vrot.slane %v123, 2
    %v125 = vadd.f32 %v123, %v124
    %v126 = vrot.slane %v125, 1
    %v127 = vadd.f32 %v125, %v126
    %v128 = vmul.f32 %v127, %v27
    %v129 = vsel %vm57, %v96, %v112
    %v130 = vsel %vm59, %v129, %v128
    %v131 = vmul.f32 %v40, %v78
    %v132 = vadd.f32 %v131, 1e-08
    %v133 = vrsqrt.pop %v132
    %v134 = vmul.f32 %v130, %v133
    %v135 = vmul.f32 %v28, 2.0
    %v136 = vmul.f32 %v135, %v60
    %v137 = vmul.f32 %v28, %v28
    %v138 = vmul.f32 %v60, %v60
    %v139 = vadd.f32 %v137, %v138
    %v140 = vadd.f32 %v139, 1e-08
    %v141 = vrcp.pop %v140
    %v142 = vmul.f32 %v136, %v141
    %v143 = vadd.f32 %v40, %v78
    %v144 = vadd.f32 %v143, 1e-08
    %v145 = vadd.f32 %v40, 1e-08
    %v146 = vadd.f32 %v78, 1e-08
    %v147 = vmul.f32 %v145, %v146
    %v148 = vrsqrt.pop %v147
    %v149 = vmul.f32 %v147, %v148
    %vm150 = vcmp.eq.f32.partialorder %v147, inf
    %v151 = vsel %vm150, %v147, %v149
    %vm152 = vcmp.eq.f32.partialorder %v147, 0.0
    %v153 = vand.u32 %v147, 2147483648
    %v154 = vsel %vm152, %v153, %v151
    %v155 = vmul.f32 %v154, 4.0
    %v156 = vmul.f32 %v144, %v144
    %v157 = vrcp.pop %v156
    %v158 = vmul.f32 %v155, %v157
    %v159 = vmul.f32 %v134, %v142
    %v160 = vmul.f32 %v159, %v158
    %vm161 = vcmask 1042432
    %v162 = vsel %vm161, %v160, 0.0
    %v163 = vld [vmem:[%s1] sm:$0xff]
    %v164 = vld [vmem:[%s1 + $0x8] sm:$0xff]
    %v165 = vld [vmem:[%s1 + $0x10] sm:$0xff]
    %v166 = vld [vmem:[%s1 + $0x18] sm:$0xff]
    %v167 = vld [vmem:[%s1 + $0x20] sm:$0xff]
    %v168 = vld [vmem:[%s1 + $0x28] sm:$0xff]
    %v169 = vld [vmem:[%s1 + $0x30] sm:$0xff]
    %v170 = vld [vmem:[%s1 + $0x38] sm:$0xff]
    %v171 = vld [vmem:[%s1 + $0x40] sm:$0xff]
    %v172 = vld [vmem:[%s1 + $0x48] sm:$0xff]
    %v173 = vld [vmem:[%s1 + $0x50] sm:$0xff]
    %v174 = vld [vmem:[%s1 + $0x58] sm:$0xff]
    %v175 = vld [vmem:[%s1 + $0x60] sm:$0xff]
    %v176 = vld [vmem:[%s1 + $0x68] sm:$0xff]
    %v177 = vld [vmem:[%s1 + $0x70] sm:$0xff]
    %v178 = vld [vmem:[%s1 + $0x78] sm:$0xff]
    %179 = vmatprep.subr.mxu0 0.0
    %180 = vmatpush1.msra.mxu0 %v163
    %181 = vmatprep.subr.mxu0 0.0
    %182 = vmatpush1.msra.mxu0 %v164
    %183 = vmatprep.subr.mxu0 0.0
    %184 = vmatpush1.msra.mxu0 %v165
    %185 = vmatprep.subr.mxu0 0.0
    %186 = vmatpush1.msra.mxu0 %v166
    %187 = vmatprep.subr.mxu0 0.0
    %188 = vmatpush1.msra.mxu0 %v167
    %189 = vmatprep.subr.mxu0 0.0
    %190 = vmatpush1.msra.mxu0 %v168
    %191 = vmatprep.subr.mxu0 0.0
    %192 = vmatpush1.msra.mxu0 %v169
    %193 = vmatprep.subr.mxu0 0.0
    %194 = vmatpush1.msra.mxu0 %v170
    %195 = vmatprep.subr.mxu0 0.0
    %196 = vmatpush1.msra.mxu0 %v171
    %197 = vmatprep.subr.mxu0 0.0
    %198 = vmatpush1.msra.mxu0 %v172
    %199 = vmatprep.subr.mxu0 0.0
    %200 = vmatpush1.msra.mxu0 %v173
    %201 = vmatprep.subr.mxu0 0.0
    %202 = vmatpush1.msra.mxu0 %v174
    %203 = vmatprep.subr.mxu0 0.0
    %204 = vmatpush1.msra.mxu0 %v175
    %205 = vmatprep.subr.mxu0 0.0
    %206 = vmatpush1.msra.mxu0 %v176
    %207 = vmatprep.subr.mxu0 0.0
    %208 = vmatpush1.msra.mxu0 %v177
    %209 = vmatprep.subr.mxu0 0.0
    %210 = vmatpush1.msra.mxu0 %v178
    %211 = vmatprep.subr.mxu0 0.0
    %212 = vmatpush1.msra.mxu0 0.0
    %213 = vmatprep.subr.mxu0 0.0
    %214 = vmatpush1.msra.mxu0 0.0
    %215 = vmatprep.subr.mxu0 0.0
    %216 = vmatpush1.msra.mxu0 0.0
    %217 = vmatprep.subr.mxu0 0.0
    %218 = vmatpush1.msra.mxu0 0.0
    %219 = vmatprep.subr.mxu0 0.0
    %220 = vmatpush1.msra.mxu0 0.0
    %221 = vmatprep.subr.mxu0 0.0
    %222 = vmatpush1.msra.mxu0 0.0
    %223 = vmatprep.subr.mxu0 0.0
    %224 = vmatpush1.msra.mxu0 0.0
    %225 = vmatprep.subr.mxu0 0.0
    %226 = vmatpush1.msra.mxu0 0.0
    %227 = vmatprep.subr.mxu0 0.0
    %228 = vmatpush1.msra.mxu0 0.0
    %229 = vmatprep.subr.mxu0 0.0
    %230 = vmatpush1.msra.mxu0 0.0
    %231 = vmatprep.subr.mxu0 0.0
    %232 = vmatpush1.msra.mxu0 0.0
    %233 = vmatprep.subr.mxu0 0.0
    %234 = vmatpush1.msra.mxu0 0.0
    %235 = vmatprep.subr.mxu0 0.0
    %236 = vmatpush1.msra.mxu0 0.0
    %237 = vmatprep.subr.mxu0 0.0
    %238 = vmatpush1.msra.mxu0 0.0
    %239 = vmatprep.subr.mxu0 0.0
    %240 = vmatpush1.msra.mxu0 0.0
    %241 = vmatprep.subr.mxu0 0.0
    %242 = vmatpush1.msra.mxu0 0.0
    %243 = vmatprep.mubr.f32.mxu0 0.0
    %244 = vmatmul.mubr.f32.gmra.mrb[0].mxu0 %v162
    %v245 = vpop.f32.mrb[0].mxu0
    %v246 = vadd.f32 0.0, %v245
    %v247 = vpop.f32.mrb[0].mxu0
    %248 = vdwg.mxu0
    %v249 = vld [vmem:[%s2] sm:$0xff]
    %v250 = vmul.f32 %v246, %v249
    %v251 = vrot.slane %v250, 4
    %v252 = vadd.f32 %v250, %v251
    %v253 = vrot.slane %v252, 2
    %v254 = vadd.f32 %v252, %v253
    %v255 = vrot.slane %v254, 1
    %v256 = vadd.f32 %v254, %v255
    %v257 = vld [vmem:[%s3] sm:$0x1]
    %v258 = vsub.f32 %v256, %v257
    %v259 = vand.u32 2147483647, %v258
    %v260 = vsel %vm57, %v259, 0.0
    %261 = vadd.xlane.f32.xlu0 %v260
    %v262 = vpop.xlane.xlu0 %261
    %v263 = vrot.slane %v262, 4
    %v264 = vadd.f32 %v262, %v263
    %v265 = vrot.slane %v264, 2
    %v266 = vadd.f32 %v264, %v265
    %v267 = vrot.slane %v266, 1
    %v268 = vadd.f32 %v266, %v267
    %s269 = vtos %v268
    %s270 = smul.f32 %s269, 0.083333336
    %s271 = scalar_lea.smem [#allocation2], 0
    %272 = sst [smem:[%s271]] %s270
    // Predicated region
    $region18: #{qloss.1} parent=1 // pred_check
      _
    $region19: #{qloss.1} parent=1 // pred_check_branch
      %274 = sbr.rel (0) target = $region21
    $region20: #{qloss.1} parent=1 // pred_region
      %s276 = ssub.s32 16, 16
      %277 = vsyncadd [#allocation3], %s276
      %280 = dma.smem_to_hbm [#allocation2], 16, %s4, [#allocation3]
    $region21: #{qloss.1} parent=1 // pred_fallthru
      _
    // Predicated region
    $region22: #{qloss.1} parent=1 // pred_check
      _
    $region23: #{qloss.1} parent=1 // pred_check_branch
      %282 = sbr.rel (0) target = $region25
    $region24: #{qloss.1} parent=1 // pred_region
      %283 = dma.done [#allocation3], 16
    $region25: #{qloss.1} parent=1 // pred_fallthru
      _
    %284 = sfence
    %285 = vsyncpa [#allocation3], 1

</llo_original>
